<compile_context>
chip_gen: v7x
topology: tpu7x:2x2x1
jax: 0.10.0
libtpu: 0.0.40
codegen_flags: <defaults>
</compile_context>

<pallas_src>
import jax
import jax.numpy as jnp
from jax.experimental import pallas as pl
from jax.experimental.pallas import tpu as pltpu


def _gadice_sums_kernel(x_ref, t_ref, s_xt_ref, s_xx_ref, s_t_ref):
    # x_ref: (B, C, T) input scores for the current spatial tile (native layout).
    # t_ref: (B, T) int32 raw labels for the same tile (pad value = -1).
    # s_*_ref: (C, 1) f32 per-class accumulators for the current parallel slice,
    #          resident across the inner ("arbitrary") spatial grid axis.
    s = pl.program_id(1)

    @pl.when(s == 0)
    def _init():
        s_xt_ref[...] = jnp.zeros_like(s_xt_ref)
        s_xx_ref[...] = jnp.zeros_like(s_xx_ref)
        s_t_ref[...] = jnp.zeros_like(s_t_ref)

    x = x_ref[...].astype(jnp.float32)                       # (B, C, T), upcast in-kernel
    t = t_ref[...]                                           # (B, T) int32

    # One compare produces the one-hot for every class at once (class = sublane axis).
    cls = jax.lax.broadcasted_iota(jnp.int32, x.shape, 1)    # class ids along axis 1
    t_oh = (t[:, None, :] == cls).astype(jnp.float32)        # (B, C, T); pad(-1) -> all zero

    # Reduce batch (cheap VPU adds) then lanes (XLU), keeping C on the sublane axis.
    s_xt_ref[...] += jnp.sum(x * t_oh, axis=0).sum(axis=-1, keepdims=True)   # (C, 1)
    s_xx_ref[...] += jnp.sum(x * x, axis=0).sum(axis=-1, keepdims=True)      # (C, 1)
    s_t_ref[...] += jnp.sum(t_oh, axis=0).sum(axis=-1, keepdims=True)        # (C, 1)


def _default_spatial_tile(B, C, HW, itemsize):
    """Lane tile: multiple of 128, sized so double-buffered x + t blocks stay small."""
    budget = 4 * 1024 * 1024                       # ~4 MiB for pipelined input blocks
    per_lane = 2 * B * C * itemsize + 2 * B * 4    # x (double-buffered) + t (double-buffered)
    t_max = max(128, (budget // per_lane) // 128 * 128)
    t_max = min(t_max, 8192)
    if HW <= t_max:
        return max(128, pl.cdiv(HW, 128) * 128)    # single lane-aligned tile
    return t_max


def gadice_loss(inputs, target, weight=None, spatial_tile=None, num_parallel=None):
    """inputs: (B, C, H, W) float; target: (B, H, W) integer class labels."""
    B, C, H, W = inputs.shape
    HW = H * W
    n_tot = float(B * HW)                          # TRUE element count (pre-padding)

    x = inputs.reshape(B, C, HW)                   # contiguous reshape, no transpose
    t = target.reshape(B, HW).astype(jnp.int32)

    itemsize = jnp.dtype(x.dtype).itemsize
    T = spatial_tile if spatial_tile is not None else _default_spatial_tile(B, C, HW, itemsize)

    # Outer "parallel" split of the spatial extent (megacore sharding on v7x;
    # negligible overhead on single-TC v5e/v6e: same total tile count, one extra
    # tiny accumulator writeback at the slice boundary).
    n_tiles = pl.cdiv(HW, T)
    if num_parallel is None:
        P = 2 if n_tiles >= 2 else 1
    else:
        P = max(1, int(num_parallel))

    HW_pad = pl.cdiv(HW, P * T) * (P * T)
    if HW_pad != HW:
        # Zero-pad scores (contributes nothing to sums); pad labels with -1 (never a class).
        x = jnp.pad(x, ((0, 0), (0, 0), (0, HW_pad - HW)))
        t = jnp.pad(t, ((0, 0), (0, HW_pad - HW)), constant_values=-1)
    n_sp = HW_pad // (P * T)                       # lane tiles per parallel slice

    out_shapes = tuple(jax.ShapeDtypeStruct((P, C, 1), jnp.float32) for _ in range(3))
    out_spec = pl.BlockSpec((None, C, 1), lambda p, s: (p, 0, 0))   # per-slice accumulator
    s_xt, s_xx, s_t = pl.pallas_call(
        _gadice_sums_kernel,
        out_shape=out_shapes,
        grid_spec=pltpu.PrefetchScalarGridSpec(
            num_scalar_prefetch=0,
            grid=(P, n_sp),
            in_specs=[
                pl.BlockSpec((B, C, T), lambda p, s: (0, 0, p * n_sp + s)),  # score tile
                pl.BlockSpec((B, T), lambda p, s: (0, p * n_sp + s)),        # label tile
            ],
            out_specs=[out_spec, out_spec, out_spec],
        ),
        compiler_params=pltpu.CompilerParams(
            dimension_semantics=("parallel", "arbitrary")),
    )(x, t)

    # Tiny per-class scalar math in JAX glue (sum over the P parallel slices first).
    s_xt = jnp.sum(s_xt, axis=0)[:, 0]
    s_xx = jnp.sum(s_xx, axis=0)[:, 0]
    s_t = jnp.sum(s_t, axis=0)[:, 0]
    smooth = jnp.float32(1e-10)
    dice = 1.0 - (2.0 * s_xt + smooth) / (s_xx + s_t + smooth)
    ga = s_xx / jnp.maximum(n_tot - s_t, 1.0)       # guard untaken-branch inf
    per_class = jnp.where(s_t > 0.0, dice, ga)

    if weight is None:
        w = jnp.ones((C,), jnp.float32)
    else:
        w = jnp.asarray(weight, jnp.float32)
    return jnp.sum(per_class * w) / C


def _gadice_reference(inputs, target):
    """Pure-JAX reference mirroring the PyTorch forward (GA=True, default flags)."""
    B, C, H, W = inputs.shape
    inputs = inputs.astype(jnp.float32)
    onehot = (target[:, None, :, :] == jnp.arange(C)[None, :, None, None]).astype(jnp.float32)
    smooth = 1e-10
    loss = 0.0
    for i in range(C):
        score = inputs[:, i]
        tgt = onehot[:, i]
        s_t = jnp.sum(tgt)
        inter = 2.0 * jnp.sum(score * tgt) + smooth
        union = jnp.sum(score * score) + jnp.sum(tgt * tgt) + smooth
        dice = 1.0 - inter / union
        ga = jnp.sum((score / jnp.sum(1.0 - tgt)) * score)
        loss = loss + jnp.where(s_t > 0, dice, ga)
    return loss / C


if __name__ == "__main__":
    key = jax.random.PRNGKey(0)
    k1, k2 = jax.random.split(key)

    # Case 1: default tiling (single spatial tile, P = 1).
    B, C, H, W = 2, 4, 16, 16
    inputs = jax.random.uniform(k1, (B, C, H, W), dtype=jnp.float32)
    # Labels drawn from {0,1,2} so class 3 is absent -> exercises the GA branch.
    target = jax.random.randint(k2, (B, H, W), 0, 3, dtype=jnp.int32)

    loss = jax.block_until_ready(gadice_loss(inputs, target))
    ref = jax.block_until_ready(_gadice_reference(inputs, target))
    assert jnp.allclose(loss, ref, atol=1e-5, rtol=1e-5), (loss, ref)

    # Case 2: force tile 128 -> 2 tiles -> parallel split P = 2, n_sp = 1.
    loss2 = jax.block_until_ready(gadice_loss(inputs, target, spatial_tile=128))
    assert jnp.allclose(loss2, ref, atol=1e-5, rtol=1e-5), (loss2, ref)

    # Case 3: non-multiple-of-128 spatial size -> exercises lane padding (pad label = -1).
    k3, k4 = jax.random.split(k2)
    inputs3 = jax.random.uniform(k3, (2, 4, 10, 10), dtype=jnp.float32)
    target3 = jax.random.randint(k4, (2, 10, 10), 0, 3, dtype=jnp.int32)
    loss3 = jax.block_until_ready(gadice_loss(inputs3, target3))
    ref3 = jax.block_until_ready(_gadice_reference(inputs3, target3))
    assert jnp.allclose(loss3, ref3, atol=1e-5, rtol=1e-5), (loss3, ref3)

    # Case 4: multi-tile per parallel slice with padding (P=2, n_sp>1).
    k5, k6 = jax.random.split(k4)
    inputs4 = jax.random.uniform(k5, (2, 4, 24, 24), dtype=jnp.float32)
    target4 = jax.random.randint(k6, (2, 24, 24), 0, 4, dtype=jnp.int32)
    loss4 = jax.block_until_ready(gadice_loss(inputs4, target4, spatial_tile=128))
    ref4 = jax.block_until_ready(_gadice_reference(inputs4, target4))
    assert jnp.allclose(loss4, ref4, atol=1e-5, rtol=1e-5), (loss4, ref4)

    print("KERNEL_OK")
</pallas_src>

<mosaic_0001>
module attributes {stable_mosaic.version = 11 : i64} {
  func.func @_gadice_sums_kernel(%arg0: i32, %arg1: i32, %arg2: memref<2x4x256xf32, #tpu.memory_space<vmem>>, %arg3: memref<2x256xi32, #tpu.memory_space<vmem>>, %arg4: memref<1x4x1xf32, #tpu.memory_space<vmem>>, %arg5: memref<1x4x1xf32, #tpu.memory_space<vmem>>, %arg6: memref<1x4x1xf32, #tpu.memory_space<vmem>>) attributes {dimension_semantics = [#tpu.dimension_semantics<parallel>, #tpu.dimension_semantics<arbitrary>], iteration_bounds = array<i64: 1, 1>, scalar_prefetch = 0 : i64, scratch_operands = 0 : i64, tpu.core_type = #tpu.core_type<tc>, window_params = [{transform_indices = @transform_0, window_bounds = array<i64: 2, 4, 256>}, {transform_indices = @transform_1, window_bounds = array<i64: 2, 256>}, {transform_indices = @transform_2, window_bounds = array<i64: 1, 4, 1>}, {transform_indices = @transform_3, window_bounds = array<i64: 1, 4, 1>}, {transform_indices = @transform_4, window_bounds = array<i64: 1, 4, 1>}]} {
    %c0_i32 = arith.constant 0 : i32
    %0 = arith.cmpi eq, %arg1, %c0_i32 : i32
    %1 = arith.extui %0 : i1 to i32
    %c0_i32_0 = arith.constant 0 : i32
    %2 = arith.cmpi ne, %1, %c0_i32_0 : i32
    scf.if %2 {
      %cst_28 = arith.constant 0.000000e+00 : f32
      %40 = vector.broadcast %cst_28 : f32 to vector<4x1xf32>
      %c0_29 = arith.constant 0 : index
      %c0_30 = arith.constant 0 : index
      %c0_31 = arith.constant 0 : index
      %41 = vector.load %arg4[%c0_29, %c0_30, %c0_31] : memref<1x4x1xf32, #tpu.memory_space<vmem>>, vector<1x4x1xf32>
      %42 = vector.shape_cast %41 : vector<1x4x1xf32> to vector<4x1xf32>
      %43 = vector.shape_cast %40 : vector<4x1xf32> to vector<1x4x1xf32>
      tpu.vector_store %arg4[%c0_29, %c0_30, %c0_31], %43 {strides = array<i32>} : memref<1x4x1xf32, #tpu.memory_space<vmem>>, vector<1x4x1xf32>,
      %cst_32 = arith.constant 0.000000e+00 : f32
      %44 = vector.broadcast %cst_32 : f32 to vector<4x1xf32>
      %c0_33 = arith.constant 0 : index
      %c0_34 = arith.constant 0 : index
      %c0_35 = arith.constant 0 : index
      %45 = vector.load %arg5[%c0_33, %c0_34, %c0_35] : memref<1x4x1xf32, #tpu.memory_space<vmem>>, vector<1x4x1xf32>
      %46 = vector.shape_cast %45 : vector<1x4x1xf32> to vector<4x1xf32>
      %47 = vector.shape_cast %44 : vector<4x1xf32> to vector<1x4x1xf32>
      tpu.vector_store %arg5[%c0_33, %c0_34, %c0_35], %47 {strides = array<i32>} : memref<1x4x1xf32, #tpu.memory_space<vmem>>, vector<1x4x1xf32>,
      %cst_36 = arith.constant 0.000000e+00 : f32
      %48 = vector.broadcast %cst_36 : f32 to vector<4x1xf32>
      %c0_37 = arith.constant 0 : index
      %c0_38 = arith.constant 0 : index
      %c0_39 = arith.constant 0 : index
      %49 = vector.load %arg6[%c0_37, %c0_38, %c0_39] : memref<1x4x1xf32, #tpu.memory_space<vmem>>, vector<1x4x1xf32>
      %50 = vector.shape_cast %49 : vector<1x4x1xf32> to vector<4x1xf32>
      %51 = vector.shape_cast %48 : vector<4x1xf32> to vector<1x4x1xf32>
      tpu.vector_store %arg6[%c0_37, %c0_38, %c0_39], %51 {strides = array<i32>} : memref<1x4x1xf32, #tpu.memory_space<vmem>>, vector<1x4x1xf32>,
    } else {
    }
    %c0 = arith.constant 0 : index
    %c0_1 = arith.constant 0 : index
    %c0_2 = arith.constant 0 : index
    %3 = vector.load %arg2[%c0, %c0_1, %c0_2] : memref<2x4x256xf32, #tpu.memory_space<vmem>>, vector<2x4x256xf32>
    %c0_3 = arith.constant 0 : index
    %c0_4 = arith.constant 0 : index
    %4 = vector.load %arg3[%c0_3, %c0_4] : memref<2x256xi32, #tpu.memory_space<vmem>>, vector<2x256xi32>
    %5 = tpu.iota {dimensions = array<i32: 1>} : vector<2x4x256xi32>
    %6 = vector.shape_cast %4 : vector<2x256xi32> to vector<2x1x256xi32>
    %7 = vector.broadcast %6 : vector<2x1x256xi32> to vector<2x4x256xi32>
    %8 = arith.cmpi eq, %7, %5 : vector<2x4x256xi32>
    %9 = arith.extui %8 : vector<2x4x256xi1> to vector<2x4x256xi32>
    %10 = arith.sitofp %9 : vector<2x4x256xi32> to vector<2x4x256xf32>
    %c0_5 = arith.constant 0 : index
    %c0_6 = arith.constant 0 : index
    %c0_7 = arith.constant 0 : index
    %11 = vector.load %arg4[%c0_5, %c0_6, %c0_7] : memref<1x4x1xf32, #tpu.memory_space<vmem>>, vector<1x4x1xf32>
    %12 = vector.shape_cast %11 : vector<1x4x1xf32> to vector<4x1xf32>
    %13 = arith.mulf %3, %10 : vector<2x4x256xf32>
    %cst = arith.constant dense<0.000000e+00> : vector<4x256xf32>
    %14 = vector.multi_reduction <add>, %13, %cst [0] : vector<2x4x256xf32> to vector<4x256xf32>
    %cst_8 = arith.constant dense<0.000000e+00> : vector<4xf32>
    %15 = vector.multi_reduction <add>, %14, %cst_8 [1] : vector<4x256xf32> to vector<4xf32>
    %16 = vector.shape_cast %15 : vector<4xf32> to vector<4x1xf32>
    %17 = arith.addf %12, %16 : vector<4x1xf32>
    %c0_9 = arith.constant 0 : index
    %c0_10 = arith.constant 0 : index
    %c0_11 = arith.constant 0 : index
    %18 = vector.load %arg4[%c0_9, %c0_10, %c0_11] : memref<1x4x1xf32, #tpu.memory_space<vmem>>, vector<1x4x1xf32>
    %19 = vector.shape_cast %18 : vector<1x4x1xf32> to vector<4x1xf32>
    %20 = vector.shape_cast %17 : vector<4x1xf32> to vector<1x4x1xf32>
    tpu.vector_store %arg4[%c0_9, %c0_10, %c0_11], %20 {strides = array<i32>} : memref<1x4x1xf32, #tpu.memory_space<vmem>>, vector<1x4x1xf32>,
    %c0_12 = arith.constant 0 : index
    %c0_13 = arith.constant 0 : index
    %c0_14 = arith.constant 0 : index
    %21 = vector.load %arg5[%c0_12, %c0_13, %c0_14] : memref<1x4x1xf32, #tpu.memory_space<vmem>>, vector<1x4x1xf32>
    %22 = vector.shape_cast %21 : vector<1x4x1xf32> to vector<4x1xf32>
    %23 = arith.mulf %3, %3 : vector<2x4x256xf32>
    %cst_15 = arith.constant dense<0.000000e+00> : vector<4x256xf32>
    %24 = vector.multi_reduction <add>, %23, %cst_15 [0] : vector<2x4x256xf32> to vector<4x256xf32>
    %cst_16 = arith.constant dense<0.000000e+00> : vector<4xf32>
    %25 = vector.multi_reduction <add>, %24, %cst_16 [1] : vector<4x256xf32> to vector<4xf32>
    %26 = vector.shape_cast %25 : vector<4xf32> to vector<4x1xf32>
    %27 = arith.addf %22, %26 : vector<4x1xf32>
    %c0_17 = arith.constant 0 : index
    %c0_18 = arith.constant 0 : index
    %c0_19 = arith.constant 0 : index
    %28 = vector.load %arg5[%c0_17, %c0_18, %c0_19] : memref<1x4x1xf32, #tpu.memory_space<vmem>>, vector<1x4x1xf32>
    %29 = vector.shape_cast %28 : vector<1x4x1xf32> to vector<4x1xf32>
    %30 = vector.shape_cast %27 : vector<4x1xf32> to vector<1x4x1xf32>
    tpu.vector_store %arg5[%c0_17, %c0_18, %c0_19], %30 {strides = array<i32>} : memref<1x4x1xf32, #tpu.memory_space<vmem>>, vector<1x4x1xf32>,
    %c0_20 = arith.constant 0 : index
    %c0_21 = arith.constant 0 : index
    %c0_22 = arith.constant 0 : index
    %31 = vector.load %arg6[%c0_20, %c0_21, %c0_22] : memref<1x4x1xf32, #tpu.memory_space<vmem>>, vector<1x4x1xf32>
    %32 = vector.shape_cast %31 : vector<1x4x1xf32> to vector<4x1xf32>
    %cst_23 = arith.constant dense<0.000000e+00> : vector<4x256xf32>
    %33 = vector.multi_reduction <add>, %10, %cst_23 [0] : vector<2x4x256xf32> to vector<4x256xf32>
    %cst_24 = arith.constant dense<0.000000e+00> : vector<4xf32>
    %34 = vector.multi_reduction <add>, %33, %cst_24 [1] : vector<4x256xf32> to vector<4xf32>
    %35 = vector.shape_cast %34 : vector<4xf32> to vector<4x1xf32>
    %36 = arith.addf %32, %35 : vector<4x1xf32>
    %c0_25 = arith.constant 0 : index
    %c0_26 = arith.constant 0 : index
    %c0_27 = arith.constant 0 : index
    %37 = vector.load %arg6[%c0_25, %c0_26, %c0_27] : memref<1x4x1xf32, #tpu.memory_space<vmem>>, vector<1x4x1xf32>
    %38 = vector.shape_cast %37 : vector<1x4x1xf32> to vector<4x1xf32>
    %39 = vector.shape_cast %36 : vector<4x1xf32> to vector<1x4x1xf32>
    tpu.vector_store %arg6[%c0_25, %c0_26, %c0_27], %39 {strides = array<i32>} : memref<1x4x1xf32, #tpu.memory_space<vmem>>, vector<1x4x1xf32>,
    return
  }
  func.func @transform_0(%arg0: i32, %arg1: i32) -> (i32, i32, i32) {
    %c1_i32 = arith.constant 1 : i32
    %0 = arith.muli %arg0, %c1_i32 : i32
    %1 = arith.addi %0, %arg1 : i32
    %c0_i32 = arith.constant 0 : i32
    %c0_i32_0 = arith.constant 0 : i32
    %c0_i32_1 = arith.constant 0 : i32
    return %c0_i32, %c0_i32_0, %1 : i32, i32, i32
  }
  func.func @transform_1(%arg0: i32, %arg1: i32) -> (i32, i32) {
    %c1_i32 = arith.constant 1 : i32
    %0 = arith.muli %arg0, %c1_i32 : i32
    %1 = arith.addi %0, %arg1 : i32
    %c0_i32 = arith.constant 0 : i32
    %c0_i32_0 = arith.constant 0 : i32
    return %c0_i32, %1 : i32, i32
  }
  func.func @transform_2(%arg0: i32, %arg1: i32) -> (i32, i32, i32) {
    %c0_i32 = arith.constant 0 : i32
    %c0_i32_0 = arith.constant 0 : i32
    %c0_i32_1 = arith.constant 0 : i32
    return %arg0, %c0_i32, %c0_i32_0 : i32, i32, i32
  }
  func.func @transform_3(%arg0: i32, %arg1: i32) -> (i32, i32, i32) {
    %c0_i32 = arith.constant 0 : i32
    %c0_i32_0 = arith.constant 0 : i32
    %c0_i32_1 = arith.constant 0 : i32
    return %arg0, %c0_i32, %c0_i32_0 : i32, i32, i32
  }
  func.func @transform_4(%arg0: i32, %arg1: i32) -> (i32, i32, i32) {
    %c0_i32 = arith.constant 0 : i32
    %c0_i32_0 = arith.constant 0 : i32
    %c0_i32_1 = arith.constant 0 : i32
    return %arg0, %c0_i32, %c0_i32_0 : i32, i32, i32
  }
}

</mosaic_0001>

<llo_original>
// kernel: tpu_custom_call.1
$region0: #{tpu_custom_call.1}
  #allocation0 [shape = 'u32[]', space=smem, size = 0x4, offset = 0x4, fixed_abs, tag = 'smem constant byte address 0x4 - core index']
  #allocation1 [shape = 'u32[144,128]{1,0:T(1,128)}', space=vmem, size = 0x12000, scoped, tag = 'internal scratch']
  %s0 = inlined_call_operand.hbm [shape: f32[2,4,256], index: 0, kind: input, shape index: {}]
  %s1 = inlined_call_operand.hbm [shape: s32[2,256], index: 1, kind: input, shape index: {}]
  %s2 = inlined_call_operand.vmem [shape: f32[1,4,1], index: 2, kind: output, shape index: {0}]
  %s3 = inlined_call_operand.vmem [shape: f32[1,4,1], index: 3, kind: output, shape index: {1}]
  %s4 = inlined_call_operand.vmem [shape: f32[1,4,1], index: 4, kind: output, shape index: {2}]
  %5 = xla_tuple %s2, %s3, %s4
  %s6 = sld [smem:[#allocation0]]
  $region46: #{tpu_custom_call.1} parent=0
    _
  %s8 = ssub.s32 1, %s6
  %s9 = scalar_select 0, %s8, %s6
  $region1: #{tpu_custom_call.1} parent=0
    #allocation2 [shape = 'u8[8192]{0}', space=vmem, size = 0x2000, scoped, tag = 'input window, operand 0, single buffered']
    #allocation3 [shape = 's32[1]{0}', space=sflag, size = 0x4, scoped, tag = 'scoped memory for tpu_custom_call.1']
    #allocation4 [shape = 'u8[2048]{0}', space=vmem, size = 0x800, scoped, tag = 'input window, operand 1, single buffered']
    #allocation5 [shape = 's32[1]{0}', space=sflag, size = 0x4, scoped, tag = 'scoped memory for tpu_custom_call.1']
    %10 = vsyncpa [#allocation3], 0
    %11 = vsyncpa [#allocation5], 0
    // Predicated region
    $region2: #{tpu_custom_call.1} parent=1 // pred_check
      _
    $region3: #{tpu_custom_call.1} parent=1 // pred_check_branch
      %13 = sbr.rel (0) target = $region5
    $region4: #{tpu_custom_call.1} parent=1 // pred_region
      %s14 = sadd.s32 0, 0
      %s15 = smul.u32 2, %s14
      %s17 = ssub.s32 256, 256
      %18 = vsyncadd [#allocation3], %s17
      %s19 = smul.addr %s15, 64
      %s20 = scalar_lea.hbm %s0, %s19
      %s21 = sshll.u32 [#allocation2], 4
      %s22 = int_to_ptr.vmem [resolvable:$true] %s21
      %27 = dma.hbm_to_vmem [thread:$0]  %s20, 256, %s22, [#allocation3], 128, 128, 8
    $region5: #{tpu_custom_call.1} parent=1 // pred_fallthru
      _
    // Predicated region
    $region6: #{tpu_custom_call.1} parent=1 // pred_check
      _
    $region7: #{tpu_custom_call.1} parent=1 // pred_check_branch
      %29 = sbr.rel (0) target = $region9
    $region8: #{tpu_custom_call.1} parent=1 // pred_region
      %s30 = sadd.s32 0, 0
      %s31 = smul.u32 2, %s30
      %s33 = ssub.s32 64, 64
      %34 = vsyncadd [#allocation5], %s33
      %s35 = smul.addr %s31, 32
      %s36 = scalar_lea.hbm %s1, %s35
      %s38 = sshll.u32 [#allocation4], 4
      %s39 = int_to_ptr.vmem [resolvable:$true] %s38
      %41 = dma.hbm_to_vmem [thread:$0]  %s36, 64, %s39, [#allocation5]
    $region9: #{tpu_custom_call.1} parent=1 // pred_fallthru
      _
    // Predicated region
    $region10: #{tpu_custom_call.1} parent=1 // pred_check
      _
    $region11: #{tpu_custom_call.1} parent=1 // pred_check_branch
      %43 = sbr.rel (0) target = $region13
    $region12: #{tpu_custom_call.1} parent=1 // pred_region
      %44 = dma.done [#allocation3], 256
    $region13: #{tpu_custom_call.1} parent=1 // pred_fallthru
      _
    // Predicated region
    $region14: #{tpu_custom_call.1} parent=1 // pred_check
      _
    $region15: #{tpu_custom_call.1} parent=1 // pred_check_branch
      %46 = sbr.rel (0) target = $region17
    $region16: #{tpu_custom_call.1} parent=1 // pred_region
      %47 = dma.done [#allocation5], 64
    $region17: #{tpu_custom_call.1} parent=1 // pred_fallthru
      _
    %s48 = sadd.s32 0, 0
    %s49 = smul.u32 2, %s48
    %s50 = sadd.s32 0, 0
    %s51 = smul.u32 2, %s50
    %p52 = scmp.eq.s32.totalorder 0, 0
    // Predicated region
    $region18: #{tpu_custom_call.1} parent=1 // pred_check
      %p53 = pneg %p52
    $region19: #{tpu_custom_call.1} parent=1 // pred_check_branch
      %55 = sbr.rel (%p53) target = $region21
    $region20: #{tpu_custom_call.1} parent=1 // pred_region
      %vm56 = vcmask 3072
      %57 = vst.msk [vmem:[%s2] sm:$0xf] %vm56, 0.0
      %58 = vst.msk [vmem:[%s3] sm:$0xf] %vm56, 0.0
      %59 = vst.msk [vmem:[%s4] sm:$0xf] %vm56, 0.0
    $region21: #{tpu_custom_call.1} parent=1 // pred_fallthru
      _
    %v60 = vld [vmem:[#allocation2] sm:$0xff]
    %v61 = vld [vmem:[#allocation2 + $0x8] sm:$0xff]
    %v62 = vld [vmem:[#allocation4] sm:$0xf]
    %v63 = vlaneseq
    %v64 = vshrl.u32 %v63, 7
    %v66 = vunpack.c.l.s4 1966171168
    %v67 = vunpack.c.0.s8 %v66
    %v68 = vlaneseq
    %v69 = vshrl.u32 %v68, 7
    %v70 = vsub.s32 %v67, %v69
    %v71 = vrot.slane %v62, %v70
    %v72 = vcombine.high %v71, %v71
    %v73 = vlaneseq
    %v74 = vshrl.u32 %v73, 7
    %v75 = vsub.s32 0, %v74
    %v76 = vrot.slane %v71, %v75
    %v77 = vlaneseq
    %v78 = vshrl.u32 %v77, 7
    %v79 = vsub.s32 1, %v78
    %v80 = vrot.slane %v71, %v79
    %v81 = vlaneseq
    %v82 = vshrl.u32 %v81, 7
    %v83 = vsub.s32 0, %v82
    %v84 = vrot.slane %v72, %v83
    %v85 = vlaneseq
    %v86 = vshrl.u32 %v85, 7
    %v87 = vsub.s32 1, %v86
    %v88 = vrot.slane %v72, %v87
    %vm89 = vcmp.eq.s32.totalorder %v76, %v64
    %vm90 = vcmp.eq.s32.totalorder %v80, %v64
    %vm91 = vcmp.eq.s32.totalorder %v84, %v64
    %vm92 = vcmp.eq.s32.totalorder %v88, %v64
    %v93 = vsel %vm89, 1, 0
    %v94 = vsel %vm90, 1, 0
    %v95 = vsel %vm91, 1, 0
    %v96 = vsel %vm92, 1, 0
    %v97 = vcvt.s32.f32 %v93
    %v98 = vcvt.s32.f32 %v94
    %v99 = vcvt.s32.f32 %v95
    %v100 = vcvt.s32.f32 %v96
    %v101 = vld [vmem:[%s2] sm:$0xf]
    %v106 = vcombine.low %v97, %v98
    %v107 = vcombine.low %v99, %v100
    %v110 = vmul.f32 %v60, %v106
    %v111 = vmul.f32 %v61, %v107
    %v114 = vcombine.high %v110, %v110
    %v115 = vcombine.high %v111, %v111
    %vm118 = vcmask 1043456
    %v119 = vsel %vm118, %v110, 0.0
    %v120 = vsel %vm118, %v111, 0.0
    %v121 = vadd.f32 %v119, %v120
    %v122 = vsel %vm118, %v114, 0.0
    %v123 = vsel %vm118, %v115, 0.0
    %v124 = vadd.f32 %v122, %v123
    %v125 = vsel %vm118, %v121, 0.0
    %v126 = vsel %vm118, %v124, 0.0
    %v127 = vadd.f32 %v125, %v126
    %128 = vadd.xlane.f32.xlu0 %v127
    %v129 = vpop.xlane.xlu0 %128
    %v130 = vadd.f32 %v101, %v129
    %vm131 = vcmask 3072
    %132 = vst.msk [vmem:[%s2] sm:$0xf] %vm131, %v130
    %v133 = vld [vmem:[%s3] sm:$0xf]
    %v134 = vmul.f32 %v60, %v60
    %v135 = vmul.f32 %v61, %v61
    %v138 = vcombine.high %v134, %v134
    %v139 = vcombine.high %v135, %v135
    %v142 = vsel %vm118, %v134, 0.0
    %v143 = vsel %vm118, %v135, 0.0
    %v144 = vadd.f32 %v142, %v143
    %v145 = vsel %vm118, %v138, 0.0
    %v146 = vsel %vm118, %v139, 0.0
    %v147 = vadd.f32 %v145, %v146
    %v148 = vsel %vm118, %v144, 0.0
    %v149 = vsel %vm118, %v147, 0.0
    %v150 = vadd.f32 %v148, %v149
    %151 = vadd.xlane.f32.xlu0 %v150
    %v152 = vpop.xlane.xlu0 %151
    %v153 = vadd.f32 %v133, %v152
    %154 = vst.msk [vmem:[%s3] sm:$0xf] %vm131, %v153
    %v155 = vld [vmem:[%s4] sm:$0xf]
    %v156 = vsel %vm118, %v97, 0.0
    %v157 = vsel %vm118, %v99, 0.0
    %v158 = vadd.f32 %v156, %v157
    %v159 = vsel %vm118, %v98, 0.0
    %v160 = vsel %vm118, %v100, 0.0
    %v161 = vadd.f32 %v159, %v160
    %v162 = vsel %vm118, %v158, 0.0
    %v163 = vsel %vm118, %v161, 0.0
    %v164 = vadd.f32 %v162, %v163
    %165 = vadd.xlane.f32.xlu0 %v164
    %v166 = vpop.xlane.xlu0 %165
    %v167 = vadd.f32 %v155, %v166
    %168 = vst.msk [vmem:[%s4] sm:$0xf] %vm131, %v167
    // Predicated region
    $region22: #{tpu_custom_call.1} parent=1 // pred_check
      _
    $region23: #{tpu_custom_call.1} parent=1 // pred_check_branch
      %170 = sbr.rel (0) target = $region25
    $region24: #{tpu_custom_call.1} parent=1 // pred_region
      _
    $region25: #{tpu_custom_call.1} parent=1 // pred_fallthru
      _
    // Predicated region
    $region26: #{tpu_custom_call.1} parent=1 // pred_check
      _
    $region27: #{tpu_custom_call.1} parent=1 // pred_check_branch
      %172 = sbr.rel (0) target = $region29
    $region28: #{tpu_custom_call.1} parent=1 // pred_region
      _
    $region29: #{tpu_custom_call.1} parent=1 // pred_fallthru
      _
    // Predicated region
    $region30: #{tpu_custom_call.1} parent=1 // pred_check
      _
    $region31: #{tpu_custom_call.1} parent=1 // pred_check_branch
      %174 = sbr.rel (0) target = $region33
    $region32: #{tpu_custom_call.1} parent=1 // pred_region
      _
    $region33: #{tpu_custom_call.1} parent=1 // pred_fallthru
      _
    // Predicated region
    $region34: #{tpu_custom_call.1} parent=1 // pred_check
      _
    $region35: #{tpu_custom_call.1} parent=1 // pred_check_branch
      %176 = sbr.rel (0) target = $region37
    $region36: #{tpu_custom_call.1} parent=1 // pred_region
      _
    $region37: #{tpu_custom_call.1} parent=1 // pred_fallthru
      _
    // Predicated region
    $region38: #{tpu_custom_call.1} parent=1 // pred_check
      _
    $region39: #{tpu_custom_call.1} parent=1 // pred_check_branch
      %178 = sbr.rel (0) target = $region41
    $region40: #{tpu_custom_call.1} parent=1 // pred_region
      _
    $region41: #{tpu_custom_call.1} parent=1 // pred_fallthru
      _
    // Predicated region
    $region42: #{tpu_custom_call.1} parent=1 // pred_check
      _
    $region43: #{tpu_custom_call.1} parent=1 // pred_check_branch
      %180 = sbr.rel (0) target = $region45
    $region44: #{tpu_custom_call.1} parent=1 // pred_region
      _
    $region45: #{tpu_custom_call.1} parent=1 // pred_fallthru
      _
    %181 = vsyncpa [#allocation3], 1
    %182 = vsyncpa [#allocation5], 1

</llo_original>
